<compile_context>
chip_gen: v5e
topology: v5e:2x2
jax: 0.10.0
libtpu: 0.0.40
codegen_flags: <defaults>
</compile_context>

<pallas_src>
import jax
import jax.numpy as jnp
from jax.experimental import pallas as pl
from jax.experimental.pallas import tpu as pltpu


_MAX_BN = 256     # sublane tile (rows / components), multiple of 8
_MAX_BT = 2048    # lane tile (time samples), multiple of 128


def _round_up(x, m):
    return ((x + m - 1) // m) * m


def _sine_wave_kernel(a_ref, w_ref, phi_ref, t_ref, out_ref):
    # a/w/phi: (BN, 1) columns; t: (1, BT) row; out: (BN, BT).
    inv_w = 1.0 / w_ref[...]                         # exact per-row reciprocal
    out_ref[...] = a_ref[...] * jnp.sin(t_ref[...] * inv_w + phi_ref[...])


def sine_wave_layer(params, t_vector, phi_previous=None, w_previous=None,
                    phi_prev=False, w_prev=False):
    """Forward pass matching SineWaveLayer.forward.

    params: dict with 'A', 'w', 'phi' of shape (n, 1); 'phi_current',
            'current_w' of shape (1,).
    t_vector: (T,) or (1, T) float32.
    Returns (sine_wave (n, T), phi_static (1,), w_static (1,)).
    """
    n = params["A"].shape[0]
    t_flat = jnp.asarray(t_vector, jnp.float32).reshape(-1)
    T = t_flat.shape[0]

    # Glue: fold optional previous-phase / previous-frequency scalars.
    phi_static = params["phi_current"]
    if phi_prev and phi_previous is not None:
        phi_static = phi_static + phi_previous
    w_static = params["current_w"]
    if w_prev and w_previous is not None:
        w_static = w_static + w_previous

    # Fold the scalar statics into the per-component columns (O(n) work).
    a_eff = params["A"].astype(jnp.float32)                     # (n, 1)
    w_eff = (params["w"] + w_static).astype(jnp.float32)        # (n, 1)
    phi_eff = (params["phi"] + phi_static).astype(jnp.float32)  # (n, 1)

    # Tile sizes: lane-dense output (BT multiple of 128), BN multiple of 8.
    BN = min(_MAX_BN, _round_up(n, 8))
    BT = min(_MAX_BT, _round_up(T, 128))
    n_pad = _round_up(n, BN)
    T_pad = _round_up(T, BT)

    # Pad to the tile grid (w padded with 1.0 so the reciprocal stays finite).
    a_p = jnp.zeros((n_pad, 1), jnp.float32).at[:n].set(a_eff)
    w_p = jnp.ones((n_pad, 1), jnp.float32).at[:n].set(w_eff)
    phi_p = jnp.zeros((n_pad, 1), jnp.float32).at[:n].set(phi_eff)
    t_p = jnp.zeros((1, T_pad), jnp.float32).at[:, :T].set(t_flat[None, :])

    grid = (n_pad // BN, T_pad // BT)

    out = pl.pallas_call(
        _sine_wave_kernel,
        out_shape=jax.ShapeDtypeStruct((n_pad, T_pad), jnp.float32),
        grid=grid,
        in_specs=[
            pl.BlockSpec((BN, 1), lambda i, j: (i, 0)),   # A
            pl.BlockSpec((BN, 1), lambda i, j: (i, 0)),   # w (+ w_static)
            pl.BlockSpec((BN, 1), lambda i, j: (i, 0)),   # phi (+ phi_static)
            pl.BlockSpec((1, BT), lambda i, j: (0, j)),   # t_vector
        ],
        out_specs=pl.BlockSpec((BN, BT), lambda i, j: (i, j)),
        compiler_params=pltpu.CompilerParams(
            dimension_semantics=("parallel", "parallel")),
    )(a_p, w_p, phi_p, t_p)

    sine_wave = out[:n, :T]
    return sine_wave, phi_static, w_static


def init_params(key, n, phi_prev=False, w_prev=False):
    """Deterministic uniform [0,1) init, mirroring torch.rand shapes."""
    keys = jax.random.split(key, 7)
    p = {
        "A": jax.random.uniform(keys[0], (n, 1), jnp.float32),
        "w": jax.random.uniform(keys[1], (n, 1), jnp.float32),
        "phi": jax.random.uniform(keys[2], (n, 1), jnp.float32),
        "phi_current": jax.random.uniform(keys[3], (1,), jnp.float32),
        "current_w": jax.random.uniform(keys[4], (1,), jnp.float32),
    }
    if phi_prev:
        p["phi_previous"] = jax.random.uniform(keys[5], (1,), jnp.float32)
    if w_prev:
        p["previous_w"] = jax.random.uniform(keys[6], (1,), jnp.float32)
    return p


def _reference(params, t_vector, phi_static, w_static):
    phi_ref = params["phi"] + phi_static
    w_ref = params["w"] + w_static
    return params["A"] * jnp.sin((1.0 / w_ref) * t_vector + phi_ref)


if __name__ == "__main__":
    key = jax.random.PRNGKey(0)
    pkey, tkey, prevkey = jax.random.split(key, 3)

    # Small example consistent with the module: n=8 components, T=16 samples.
    n, T = 8, 16
    params = init_params(pkey, n)
    t_vector = jnp.linspace(0.0, 2.0, T, dtype=jnp.float32).reshape(1, T)

    sine_wave, phi_static, w_static = sine_wave_layer(params, t_vector)
    jax.block_until_ready(sine_wave)

    expected = _reference(params, t_vector, phi_static, w_static)
    assert sine_wave.shape == (n, T)
    assert jnp.allclose(sine_wave, expected, atol=1e-5, rtol=1e-5)

    # Also exercise the phi_prev / w_prev glue path.
    params2 = init_params(pkey, n, phi_prev=True, w_prev=True)
    phi_previous = jax.random.uniform(prevkey, (1,), jnp.float32)
    w_previous = jax.random.uniform(tkey, (1,), jnp.float32)
    sw2, ps2, ws2 = sine_wave_layer(params2, t_vector,
                                    phi_previous=phi_previous,
                                    w_previous=w_previous,
                                    phi_prev=True, w_prev=True)
    jax.block_until_ready(sw2)
    expected2 = _reference(params2, t_vector, ps2, ws2)
    assert jnp.allclose(sw2, expected2, atol=1e-5, rtol=1e-5)
    assert jnp.allclose(ps2, params2["phi_current"] + phi_previous)
    assert jnp.allclose(ws2, params2["current_w"] + w_previous)

    # A non-toy, non-divisible shape to exercise the tiled grid + padding.
    n_big, T_big = 300, 3000
    params_big = init_params(jax.random.PRNGKey(1), n_big)
    t_big = jnp.linspace(0.0, 10.0, T_big, dtype=jnp.float32).reshape(1, T_big)
    sw_big, ps_big, ws_big = sine_wave_layer(params_big, t_big)
    jax.block_until_ready(sw_big)
    expected_big = _reference(params_big, t_big, ps_big, ws_big)
    assert sw_big.shape == (n_big, T_big)
    assert jnp.allclose(sw_big, expected_big, atol=1e-5, rtol=1e-5)

    print("KERNEL_OK")
</pallas_src>

<mosaic_0001>
module attributes {stable_mosaic.version = 11 : i64} {
  func.func @_sine_wave_kernel(%arg0: i32, %arg1: i32, %arg2: memref<8x1xf32, #tpu.memory_space<vmem>>, %arg3: memref<8x1xf32, #tpu.memory_space<vmem>>, %arg4: memref<8x1xf32, #tpu.memory_space<vmem>>, %arg5: memref<1x128xf32, #tpu.memory_space<vmem>>, %arg6: memref<8x128xf32, #tpu.memory_space<vmem>>) attributes {dimension_semantics = [#tpu.dimension_semantics<parallel>, #tpu.dimension_semantics<parallel>], iteration_bounds = array<i64: 1, 1>, scalar_prefetch = 0 : i64, scratch_operands = 0 : i64, tpu.core_type = #tpu.core_type<tc>, window_params = [{transform_indices = @transform_0, window_bounds = array<i64: 8, 1>}, {transform_indices = @transform_1, window_bounds = array<i64: 8, 1>}, {transform_indices = @transform_2, window_bounds = array<i64: 8, 1>}, {transform_indices = @transform_3, window_bounds = array<i64: 1, 128>}, {transform_indices = @transform_4, window_bounds = array<i64: 8, 128>}]} {
    %c0 = arith.constant 0 : index
    %c0_0 = arith.constant 0 : index
    %0 = vector.load %arg3[%c0, %c0_0] : memref<8x1xf32, #tpu.memory_space<vmem>>, vector<8x1xf32>
    %cst = arith.constant 1.000000e+00 : f32
    %1 = vector.broadcast %cst : f32 to vector<8x1xf32>
    %2 = arith.divf %1, %0 : vector<8x1xf32>
    %c0_1 = arith.constant 0 : index
    %c0_2 = arith.constant 0 : index
    %3 = vector.load %arg2[%c0_1, %c0_2] : memref<8x1xf32, #tpu.memory_space<vmem>>, vector<8x1xf32>
    %c0_3 = arith.constant 0 : index
    %c0_4 = arith.constant 0 : index
    %4 = vector.load %arg5[%c0_3, %c0_4] : memref<1x128xf32, #tpu.memory_space<vmem>>, vector<1x128xf32>
    %5 = vector.broadcast %4 : vector<1x128xf32> to vector<8x128xf32>
    %6 = vector.broadcast %2 : vector<8x1xf32> to vector<8x128xf32>
    %7 = arith.mulf %5, %6 : vector<8x128xf32>
    %c0_5 = arith.constant 0 : index
    %c0_6 = arith.constant 0 : index
    %8 = vector.load %arg4[%c0_5, %c0_6] : memref<8x1xf32, #tpu.memory_space<vmem>>, vector<8x1xf32>
    %9 = vector.broadcast %8 : vector<8x1xf32> to vector<8x128xf32>
    %10 = arith.addf %7, %9 : vector<8x128xf32>
    %11 = math.sin %10 : vector<8x128xf32>
    %12 = vector.broadcast %3 : vector<8x1xf32> to vector<8x128xf32>
    %13 = arith.mulf %12, %11 : vector<8x128xf32>
    %c0_7 = arith.constant 0 : index
    %c0_8 = arith.constant 0 : index
    %14 = vector.load %arg6[%c0_7, %c0_8] : memref<8x128xf32, #tpu.memory_space<vmem>>, vector<8x128xf32>
    tpu.vector_store %arg6[%c0_7, %c0_8], %13 {strides = array<i32>} : memref<8x128xf32, #tpu.memory_space<vmem>>, vector<8x128xf32>,
    return
  }
  func.func @transform_0(%arg0: i32, %arg1: i32) -> (i32, i32) {
    %c0_i32 = arith.constant 0 : i32
    %c0_i32_0 = arith.constant 0 : i32
    return %arg0, %c0_i32 : i32, i32
  }
  func.func @transform_1(%arg0: i32, %arg1: i32) -> (i32, i32) {
    %c0_i32 = arith.constant 0 : i32
    %c0_i32_0 = arith.constant 0 : i32
    return %arg0, %c0_i32 : i32, i32
  }
  func.func @transform_2(%arg0: i32, %arg1: i32) -> (i32, i32) {
    %c0_i32 = arith.constant 0 : i32
    %c0_i32_0 = arith.constant 0 : i32
    return %arg0, %c0_i32 : i32, i32
  }
  func.func @transform_3(%arg0: i32, %arg1: i32) -> (i32, i32) {
    %c0_i32 = arith.constant 0 : i32
    %c0_i32_0 = arith.constant 0 : i32
    return %c0_i32, %arg1 : i32, i32
  }
  func.func @transform_4(%arg0: i32, %arg1: i32) -> (i32, i32) {
    %c0_i32 = arith.constant 0 : i32
    return %arg0, %arg1 : i32, i32
  }
}

</mosaic_0001>

<llo_original>
// kernel: tpu_custom_call.1
$region0: #{tpu_custom_call.1}
  #allocation0 [shape = 'u32[]', space=smem, size = 0x4, offset = 0x4, fixed_abs, tag = 'smem constant byte address 0x4 - core index']
  #allocation1 [shape = 'u32[72,128]{1,0:T(1,128)}', space=vmem, size = 0x9000, scoped, tag = 'internal scratch']
  %s0 = inlined_call_operand.vmem [shape: f32[8,1], index: 0, kind: input, shape index: {}]
  %s1 = inlined_call_operand.vmem [shape: f32[8,1], index: 1, kind: input, shape index: {}]
  %s2 = inlined_call_operand.vmem [shape: f32[8,1], index: 2, kind: input, shape index: {}]
  %s3 = inlined_call_operand.vmem [shape: f32[1,128], index: 3, kind: input, shape index: {}]
  %s4 = inlined_call_operand.hbm [shape: f32[8,128], index: 4, kind: output, shape index: {}]
  %s5 = sld [smem:[#allocation0]]
  $region26: #{tpu_custom_call.1} parent=0
    _
  %s7 = ssub.s32 1, %s5
  %s8 = scalar_select 0, %s7, %s5
  $region1: #{tpu_custom_call.1} parent=0
    #allocation2 [shape = 'u8[4096]{0}', space=vmem, size = 0x1000, scoped, tag = 'output window, operand 0, single buffered']
    #allocation3 [shape = 's32[1]{0}', space=sflag, size = 0x4, scoped, tag = 'scoped memory for tpu_custom_call.1']
    %9 = vsyncpa [#allocation3], 0
    // Predicated region
    $region2: #{tpu_custom_call.1} parent=1 // pred_check
      _
    $region3: #{tpu_custom_call.1} parent=1 // pred_check_branch
      %11 = sbr.rel (0) target = $region5
    $region4: #{tpu_custom_call.1} parent=1 // pred_region
      _
    $region5: #{tpu_custom_call.1} parent=1 // pred_fallthru
      _
    // Predicated region
    $region6: #{tpu_custom_call.1} parent=1 // pred_check
      _
    $region7: #{tpu_custom_call.1} parent=1 // pred_check_branch
      %13 = sbr.rel (0) target = $region9
    $region8: #{tpu_custom_call.1} parent=1 // pred_region
      _
    $region9: #{tpu_custom_call.1} parent=1 // pred_fallthru
      _
    // Predicated region
    $region10: #{tpu_custom_call.1} parent=1 // pred_check
      _
    $region11: #{tpu_custom_call.1} parent=1 // pred_check_branch
      %15 = sbr.rel (0) target = $region13
    $region12: #{tpu_custom_call.1} parent=1 // pred_region
      _
    $region13: #{tpu_custom_call.1} parent=1 // pred_fallthru
      _
    // Predicated region
    $region14: #{tpu_custom_call.1} parent=1 // pred_check
      _
    $region15: #{tpu_custom_call.1} parent=1 // pred_check_branch
      %17 = sbr.rel (0) target = $region17
    $region16: #{tpu_custom_call.1} parent=1 // pred_region
      _
    $region17: #{tpu_custom_call.1} parent=1 // pred_fallthru
      _
    %v18 = vld [vmem:[%s1] sm:$0xff]
    %v19 = vrcp.pop %v18
    %v20 = vmul.f32 %v18, %v19
    %v21 = vsub.f32 1.0, %v20
    %v22 = vmul.f32 %v19, %v21
    %v23 = vadd.f32 %v19, %v22
    %vm24 = vweird.f32 %v18
    %vm25 = vweird.f32 %v19
    %vm26 = vmor %vm24, %vm25
    %v27 = vsel %vm26, %v19, %v23
    %v28 = vand.u32 2147483647, %v18
    %vm29 = vcmp.eq.f32.partialorder %v28, 8.507059e+37
    %v30 = vand.u32 %v18, 2147483648
    %v31 = vor.u32 1.1754944e-38, %v30
    %v32 = vsel %vm29, %v31, %v27
    %v33 = vmul.f32 1.0, %v32
    %v34 = vld [vmem:[%s0] sm:$0xff]
    %v35 = vld [vmem:[%s3] sm:$0x1]
    %v37 = vperm.slane %v35, 0
    %40 = vset.pattern.permute.xlu0 0
    %41 = vperm.xlu0 %40, %v33
    %v42 = vpop.permute.xlu0 %41
    %v44 = vmul.f32 %v37, %v42
    %v45 = vld [vmem:[%s2] sm:$0xff]
    %47 = vset.pattern.permute.xlu0 0
    %48 = vperm.xlu0 %47, %v45
    %v49 = vpop.permute.xlu0 %48
    %v51 = vadd.f32 %v44, %v49
    %v52 = vand.u32 2147483647, %v51
    %vm53 = vcmp.le.f32.partialorder %v52, 0.7853982
    %vm54 = vcmp.lt.s32.totalorder %v51, 0
    %v55 = vand.u32 %v51, 2139095040
    %v56 = vshrl.u32 %v55, 23
    %v57 = vsub.s32 %v56, 127
    %v58 = vand.u32 2147483647, %v51
    %v59 = vand.u32 %v58, 8388607
    %v60 = vor.u32 %v59, 8388608
    %v61 = vsub.s32 0, %v60
    %v62 = vadd.s32 %v57, 1
    %vm63 = vcmp.gt.s32.totalorder %v62, 0
    %v64 = vsel %vm63, %v62, 0
    %v65 = vshrl.u32 %v64, 5
    %v66 = vand.u32 %v64, 31
    %v67 = vsub.s32 32, %v66
    %v68 = vshrl.u32 683565275, %v67
    %v69 = vshll.u32 683565275, %v66
    %v70 = vshrl.u32 2475754826, %v67
    %v71 = vor.u32 %v69, %v70
    %v72 = vshll.u32 2475754826, %v66
    %v73 = vshrl.u32 2131351028, %v67
    %v74 = vor.u32 %v72, %v73
    %v75 = vshll.u32 2131351028, %v66
    %v76 = vshrl.u32 2102212464, %v67
    %v77 = vor.u32 %v75, %v76
    %v78 = vshll.u32 2102212464, %v66
    %v79 = vshrl.u32 920167782, %v67
    %v80 = vor.u32 %v78, %v79
    %v81 = vshll.u32 920167782, %v66
    %v82 = vshrl.u32 1326507024, %v67
    %v83 = vor.u32 %v81, %v82
    %vm84 = vcmp.lt.s32.totalorder %v65, 1
    %vm85 = vcmp.lt.s32.totalorder %v65, 2
    %vm86 = vcmp.lt.s32.totalorder %v65, 3
    %vm87 = vcmp.lt.s32.totalorder %v65, 4
    %v88 = vsel %vm84, %v68, %v71
    %v89 = vsel %vm87, %v77, 2102212464
    %v90 = vsel %vm86, %v74, %v89
    %v91 = vsel %vm85, %v88, %v90
    %v92 = vsel %vm84, %v71, %v74
    %v93 = vsel %vm87, %v80, 920167782
    %v94 = vsel %vm86, %v77, %v93
    %v95 = vsel %vm85, %v92, %v94
    %v96 = vsel %vm84, %v74, %v77
    %v97 = vsel %vm87, %v83, 1326507024
    %v98 = vsel %vm86, %v80, %v97
    %v99 = vsel %vm85, %v96, %v98
    %v100 = vshll.u32 %v60, 8
    %v101 = vand.u32 %v100, 65535
    %v102 = vshrl.u32 %v100, 16
    %v103 = vand.u32 %v99, 65535
    %v104 = vshrl.u32 %v99, 16
    %v105 = vmul.u32 %v101, %v103
    %v106 = vmul.u32 %v101, %v104
    %v107 = vmul.u32 %v102, %v103
    %v108 = vmul.u32 %v102, %v104
    %v109 = vshll.u32 %v106, 16
    %v110 = vshrl.u32 %v106, 16
    %v111 = vshll.u32 %v107, 16
    %v112 = vshrl.u32 %v107, 16
    %vm113 = vc.u32 %v105, %v109
    %v114 = vsel %vm113, 1, 0
    %v115 = vadd.s32 %v105, %v109
    %v116 = vadd.s32 %v108, %v114
    %vm117 = vc.u32 %v115, %v111
    %v118 = vsel %vm117, 1, 0
    %v119 = vadd.s32 %v115, %v111
    %v120 = vadd.s32 %v116, %v118
    %v121 = vadd.s32 %v120, %v110
    %v122 = vadd.s32 %v121, %v112
    %v123 = vand.u32 %v100, 65535
    %v124 = vshrl.u32 %v100, 16
    %v125 = vand.u32 %v95, 65535
    %v126 = vshrl.u32 %v95, 16
    %v127 = vmul.u32 %v123, %v125
    %v128 = vmul.u32 %v123, %v126
    %v129 = vmul.u32 %v124, %v125
    %v130 = vmul.u32 %v124, %v126
    %v131 = vshll.u32 %v128, 16
    %v132 = vshrl.u32 %v128, 16
    %v133 = vshll.u32 %v129, 16
    %v134 = vshrl.u32 %v129, 16
    %vm135 = vc.u32 %v127, %v131
    %v136 = vsel %vm135, 1, 0
    %v137 = vadd.s32 %v127, %v131
    %v138 = vadd.s32 %v130, %v136
    %vm139 = vc.u32 %v137, %v133
    %v140 = vsel %vm139, 1, 0
    %v141 = vadd.s32 %v137, %v133
    %v142 = vadd.s32 %v138, %v140
    %v143 = vadd.s32 %v142, %v132
    %v144 = vadd.s32 %v143, %v134
    %v145 = vmul.u32 %v100, %v91
    %v146 = vadd.s32 %v122, %v141
    %vm147 = vc.u32 %v122, %v141
    %v148 = vadd.s32 %v144, 1
    %v149 = vsel %vm147, %v148, %v144
    %v150 = vadd.s32 %v145, %v149
    %v151 = vadd.s32 %v150, 536870912
    %v152 = vshrl.u32 %v151, 30
    %v153 = vshll.u32 %v152, 30
    %v154 = vsub.s32 %v150, %v153
    %vm155 = vcmp.lt.s32.totalorder %v154, 0
    %v156 = vsub.s32 0, %v154
    %v157 = vsel %vm155, %v156, %v154
    %v158 = vclz %v157
    %v159 = vsub.s32 %v158, 2
    %vm160 = vcmp.gt.s32.totalorder 0, %v159
    %v161 = vsel %vm160, 0, %v159
    %v162 = vsub.s32 32, %v161
    %v163 = vshll.u32 %v154, %v161
    %v164 = vshrl.u32 %v146, %v162
    %v165 = vor.u32 %v163, %v164
    %v166 = vsub.s32 4294967266, %v161
    %v167 = vadd.s32 %v166, 127
    %v168 = vshll.u32 %v167, 23
    %v169 = vor.u32 4788187, %v168
    %v170 = vand.u32 2147483647, %v169
    %v172 = vcvt.s32.f32 %v165
    %v173 = vmul.f32 %v172, %v170
    %v174 = vxor.u32 %v173, 2147483648
    %v175 = vsel %vm54, %v174, %v173
    %v176 = vsub.s32 4, %v152
    %v177 = vsel %vm54, %v176, %v152
    %v178 = vsel %vm53, %v51, %v175
    %v179 = vsel %vm53, 0, %v177
    %v180 = vmul.f32 %v178, %v178
    %v181 = vmul.f32 %v180, -0.001358992
    %v182 = vadd.f32 %v181, 0.041655596
    %v183 = vmul.f32 %v180, %v182
    %v184 = vadd.f32 %v183, -0.4999988
    %v185 = vmul.f32 %v180, %v184
    %v186 = vadd.f32 1.0, %v185
    %v187 = vmul.f32 %v178, %v178
    %v188 = vmul.f32 %v187, -0.00019511016
    %v189 = vadd.f32 %v188, 0.008332121
    %v190 = vmul.f32 %v187, %v189
    %v191 = vadd.f32 %v190, -0.16666654
    %v192 = vmul.f32 %v187, %v191
    %v193 = vadd.f32 %v192, 1.0
    %v194 = vmul.f32 %v193, %v178
    %vm195 = vweird.f32 %v51
    %v196 = vadd.s32 %v179, 3
    %v197 = vand.u32 %v196, 3
    %vm198 = vcmp.lt.s32.totalorder %v197, 2
    %vm199 = vcmp.eq.s32.totalorder %v197, 0
    %v200 = vxor.u32 %v194, 2147483648
    %v201 = vsel %vm199, %v186, %v200
    %vm202 = vcmp.eq.s32.totalorder %v197, 2
    %v203 = vxor.u32 %v186, 2147483648
    %v204 = vsel %vm202, %v203, %v194
    %v205 = vsel %vm198, %v201, %v204
    %v206 = vsel %vm195, nan, %v205
    %208 = vset.pattern.permute.xlu0 0
    %209 = vperm.xlu0 %208, %v34
    %v210 = vpop.permute.xlu0 %209
    %v212 = vmul.f32 %v210, %v206
    %213 = vst [vmem:[#allocation2] sm:$0xff] %v212
    // Predicated region
    $region18: #{tpu_custom_call.1} parent=1 // pred_check
      _
    $region19: #{tpu_custom_call.1} parent=1 // pred_check_branch
      %215 = sbr.rel (0) target = $region21
    $region20: #{tpu_custom_call.1} parent=1 // pred_region
      %217 = vsyncadd [#allocation3], 0
      %s219 = sshll.u32 [#allocation2], 4
      %s220 = int_to_ptr.vmem [resolvable:$true] %s219
      %s221 = sshll.u32 %s4, 4
      %s222 = int_to_ptr.hbm [resolvable:$true] %s221
      %224 = dma.vmem_to_hbm [thread:$0]  %s220, 128, %s222, [#allocation3]
    $region21: #{tpu_custom_call.1} parent=1 // pred_fallthru
      _
    // Predicated region
    $region22: #{tpu_custom_call.1} parent=1 // pred_check
      _
    $region23: #{tpu_custom_call.1} parent=1 // pred_check_branch
      %226 = sbr.rel (0) target = $region25
    $region24: #{tpu_custom_call.1} parent=1 // pred_region
      %228 = dma.done [#allocation3], 128
    $region25: #{tpu_custom_call.1} parent=1 // pred_fallthru
      _
    %229 = vsyncpa [#allocation3], 1

</llo_original>
